<compile_context>
chip_gen: v7x
topology: tpu7x:2x2x1
jax: 0.10.0
libtpu: 0.0.40
codegen_flags: <defaults>
</compile_context>

<pallas_src>
import functools
import math
import numpy as np
import jax
import jax.numpy as jnp
from jax import lax
from jax.experimental import pallas as pl
from jax.experimental.pallas import tpu as pltpu


# ----------------------------- Pallas kernel -------------------------------
def _adapter_kernel(x_ref, w_ref, b_ref, g_ref, be_ref, pos_ref, avg_ref,
                    o_ref, *, q):
    # patch-embedding conv for `pack` tokens per lane-dense row: one MXU matmul
    y = jnp.dot(x_ref[...], w_ref[...],
                preferred_element_type=jnp.float32) + b_ref[...]
    # per-token LayerNorm (eps=1e-5) over each E-lane group, computed with a
    # block-diagonal averaging matmul in the two-pass (numerically safe) form.
    mu = jnp.dot(y, avg_ref[...], preferred_element_type=jnp.float32)
    d = y - mu
    var = jnp.dot(d * d, avg_ref[...], preferred_element_type=jnp.float32)
    y = d * lax.rsqrt(var + 1e-5)
    y = y * g_ref[...] + be_ref[...]
    # LeakyReLU(0.1)
    y = jnp.where(y > 0, y, 0.1 * y)
    # + absolute sincos positional embedding; the per-batch table is resident
    # in VMEM and broadcast on-chip to the q batches of this tile.
    pos = pos_ref[...]
    if q > 1:
        pos = jnp.concatenate([pos] * q, axis=0)
    o_ref[...] = y + pos


def _pick_batches_per_tile(B, L, pack, target_tokens=2048):
    """Batches per grid tile: divisor of B (no ragged tiles), packed sublane
    count a multiple of 8 (or the full extent), <= ~target tokens, and < B when
    possible so the grid has >=2 tiles (v7x: two TensorCores)."""
    Lp = max(1, L // pack)
    divisors = [d for d in range(1, B + 1) if B % d == 0]
    valid = [d for d in divisors if (d * Lp) % 8 == 0 or d == B]
    multi = [d for d in valid if d < B]
    pool = multi if multi else valid
    within = [d for d in pool if d * L <= target_tokens]
    return max(within) if within else min(pool)


def adapter_tokens(patches_p, w_p, b_p, g_p, be_p, pos_p, avg, *, q):
    Rp, KP = patches_p.shape
    EP = w_p.shape[1]
    Lp = pos_p.shape[0]
    tile = q * Lp
    assert Rp % tile == 0
    nsteps = Rp // tile
    kernel = functools.partial(_adapter_kernel, q=q)
    return pl.pallas_call(
        kernel,
        out_shape=jax.ShapeDtypeStruct((Rp, EP), jnp.float32),
        grid_spec=pl.GridSpec(
            grid=(nsteps,),
            in_specs=[
                pl.BlockSpec((tile, KP), lambda i: (i, 0)),   # packed patches
                pl.BlockSpec((KP, EP), lambda i: (0, 0)),     # block-diag weight
                pl.BlockSpec((1, EP), lambda i: (0, 0)),      # bias
                pl.BlockSpec((1, EP), lambda i: (0, 0)),      # ln gamma
                pl.BlockSpec((1, EP), lambda i: (0, 0)),      # ln beta
                pl.BlockSpec((Lp, EP), lambda i: (0, 0)),     # pos table (resident)
                pl.BlockSpec((EP, EP), lambda i: (0, 0)),     # LN averaging matrix
            ],
            out_specs=pl.BlockSpec((tile, EP), lambda i: (i, 0)),
        ),
        compiler_params=pltpu.CompilerParams(
            dimension_semantics=("parallel",),
            # let XLA fuse the patch relayout into the pallas_call input
            allow_input_fusion=[True, False, False, False, False, False, False],
        ),
    )(patches_p, w_p, b_p, g_p, be_p, pos_p, avg)


# ------------------------------- glue (JAX) ---------------------------------
def get_2d_st_sincos_pos_embed(embed_dim, grid_size):
    """Matches the PyTorch helper: only the joint index is embedded."""
    grid_T, grid_J = grid_size
    pos = np.tile(np.arange(grid_J), grid_T).astype(np.float32)[:, None]
    pe = np.zeros((grid_T * grid_J, embed_dim), dtype=np.float32)
    div_term = np.exp(np.arange(0, embed_dim, 2).astype(np.float32)
                      * -(math.log(10000.0) / embed_dim))
    pe[:, 0::2] = np.sin(pos * div_term)
    pe[:, 1::2] = np.cos(pos * div_term)
    return jnp.asarray(pe)                                          # (L, E)


def forward(x_NCTVM, params, patch_size):
    """x_NCTVM: (N, C, T, V, M) float32 — same layout the PyTorch forward takes."""
    pT, pJ = patch_size
    N, C, T, V, M = x_NCTVM.shape
    B = N * M
    Tp = (T - pT) // pT + 1
    Jp = (V - pJ) // pJ + 1
    L = Tp * Jp
    K = C * pT * pJ
    E = params["proj_kernel_bias"].shape[0]

    # token packing factor for lane-dense I/O (pack tokens share a 128-lane row)
    pack = 128 // E if (E <= 128 and 128 % E == 0) else 1
    if pack > 1 and L % pack != 0:
        pack = 1
    Lp = L // pack

    # One relayout: (N,C,Tp,pT,Jp,pJ,M) -> (N,M,Tp,Jp,C,pT,pJ); the final reshape
    # to (B*L/pack, pack*K) is free.  allow_input_fusion lets XLA fuse this
    # transpose into the pallas_call input instead of a standalone HBM pass.
    xr = x_NCTVM[:, :, :Tp * pT, :Jp * pJ, :].reshape(N, C, Tp, pT, Jp, pJ, M)
    patches_p = jnp.transpose(xr, (0, 6, 2, 4, 1, 3, 5)).reshape(B * Lp, pack * K)
    patches_p = patches_p.astype(jnp.float32)

    # conv weight (E,4,pT,pJ) -> keep channels [0,1,2] -> (K,E) in (c,dt,dj)
    # order -> block-diagonal (pack*K, pack*E) for the packed matmul.
    w = params["proj_kernel_weight"][:, (0, 1, 2), :, :]            # (E,3,pT,pJ)
    w = jnp.transpose(w, (1, 2, 3, 0)).reshape(K, E).astype(jnp.float32)
    eye = jnp.eye(pack, dtype=jnp.float32)
    w_p = jnp.kron(eye, w)                                          # (pack*K, pack*E)

    b_p = jnp.tile(params["proj_kernel_bias"].astype(jnp.float32), pack).reshape(1, pack * E)
    g_p = jnp.tile(params["ln_gamma"].astype(jnp.float32), pack).reshape(1, pack * E)
    be_p = jnp.tile(params["ln_beta"].astype(jnp.float32), pack).reshape(1, pack * E)

    pos = params["pos_embed"].astype(jnp.float32)                   # (L, E)
    pos_p = pos.reshape(Lp, pack * E)                               # free reshape
    # per-token-group averaging matrix for LayerNorm stats
    avg = jnp.kron(eye, jnp.full((E, E), 1.0 / E, dtype=jnp.float32))

    q = _pick_batches_per_tile(B, L, pack)
    tokens_p = adapter_tokens(patches_p, w_p, b_p, g_p, be_p, pos_p, avg, q=q)
    tokens = tokens_p.reshape(B, L, E)                              # free reshape

    # NOTE: output['sparse_labeling'] (the permuted raw input) is intentionally
    # not re-materialized here to avoid an extra HBM copy.
    return {
        "adapter_output_sparse_labeling": {
            "tokens": tokens, "Bs": B, "N_H": Tp, "N_W": Jp,
            "attn_mask": None,
            "pos_embed": jnp.broadcast_to(pos[None], (B, L, E)),
        },
        "batch_size": N,
        "nested_mask": None,
    }
    # TODO(synk): text-embedding / attention-head / full_padding /
    # learnable_interpolate branches are disabled in the default config and not
    # implemented here.


# ------------------------------ reference -----------------------------------
def reference(x_NCTVM, params, patch_size):
    pT, pJ = patch_size
    N, C, T, V, M = x_NCTVM.shape
    x = jnp.transpose(x_NCTVM, (0, 4, 1, 2, 3)).reshape(N * M, C, T, V)
    w = params["proj_kernel_weight"][:, (0, 1, 2), :, :]
    y = lax.conv_general_dilated(x, w, window_strides=(pT, pJ), padding="VALID",
                                 dimension_numbers=("NCHW", "OIHW", "NCHW"))
    y = y + params["proj_kernel_bias"][None, :, None, None]
    yt = jnp.transpose(y, (0, 2, 3, 1))
    mu = yt.mean(-1, keepdims=True)
    var = ((yt - mu) ** 2).mean(-1, keepdims=True)
    yt = (yt - mu) / jnp.sqrt(var + 1e-5)
    yt = yt * params["ln_gamma"] + params["ln_beta"]
    yt = jnp.where(yt > 0, yt, 0.1 * yt)
    y = jnp.transpose(yt, (0, 3, 1, 2))
    B, E, Tp, Jp = y.shape
    tokens = jnp.transpose(y.reshape(B, E, Tp * Jp), (0, 2, 1))
    return tokens + params["pos_embed"][None]


# --------------------------------- main --------------------------------------
if __name__ == "__main__":
    N, M = 2, 2                 # batch, persons
    C = 3                       # in_chans
    T, V = 8, 16                # num_frames, num_joints
    E = 32                      # embed_dim
    patch_size = (2, 4)         # (pT, pJ); stride_level=(1,1) -> stride == patch
    Tp = (T - patch_size[0]) // patch_size[0] + 1
    Jp = (V - patch_size[1]) // patch_size[1] + 1

    key = jax.random.PRNGKey(0)
    kx, kw, kb = jax.random.split(key, 3)
    x = jax.random.normal(kx, (N, C, T, V, M), dtype=jnp.float32)

    params = {
        "proj_kernel_weight": 0.1 * jax.random.normal(
            kw, (E, 4, patch_size[0], patch_size[1]), dtype=jnp.float32),
        "proj_kernel_bias": 0.1 * jax.random.normal(kb, (E,), dtype=jnp.float32),
        "ln_gamma": jnp.ones((E,), jnp.float32),
        "ln_beta": jnp.zeros((E,), jnp.float32),
        "pos_embed": get_2d_st_sincos_pos_embed(E, (Tp, Jp)),        # (L, E)
    }

    out = forward(x, params, patch_size)
    tokens = out["adapter_output_sparse_labeling"]["tokens"]
    jax.block_until_ready(tokens)

    ref = reference(x, params, patch_size)
    np.testing.assert_allclose(np.asarray(tokens), np.asarray(ref),
                               rtol=1e-4, atol=1e-4)
    print("KERNEL_OK")
</pallas_src>

<mosaic_0001>
module attributes {stable_mosaic.version = 11 : i64} {
  func.func @_adapter_kernel(%arg0: i32, %arg1: memref<8x96xf32, #tpu.memory_space<vmem>>, %arg2: memref<96x128xf32, #tpu.memory_space<vmem>>, %arg3: memref<1x128xf32, #tpu.memory_space<vmem>>, %arg4: memref<1x128xf32, #tpu.memory_space<vmem>>, %arg5: memref<1x128xf32, #tpu.memory_space<vmem>>, %arg6: memref<4x128xf32, #tpu.memory_space<vmem>>, %arg7: memref<128x128xf32, #tpu.memory_space<vmem>>, %arg8: memref<8x128xf32, #tpu.memory_space<vmem>>) attributes {dimension_semantics = [#tpu.dimension_semantics<parallel>], iteration_bounds = array<i64: 2>, scalar_prefetch = 0 : i64, scratch_operands = 0 : i64, tpu.core_type = #tpu.core_type<tc>, window_params = [{transform_indices = @transform_0, window_bounds = array<i64: 8, 96>}, {pipeline_mode = #tpu.pipeline_mode<synchronous>, transform_indices = @transform_1, window_bounds = array<i64: 96, 128>}, {pipeline_mode = #tpu.pipeline_mode<synchronous>, transform_indices = @transform_2, window_bounds = array<i64: 1, 128>}, {pipeline_mode = #tpu.pipeline_mode<synchronous>, transform_indices = @transform_3, window_bounds = array<i64: 1, 128>}, {pipeline_mode = #tpu.pipeline_mode<synchronous>, transform_indices = @transform_4, window_bounds = array<i64: 1, 128>}, {pipeline_mode = #tpu.pipeline_mode<synchronous>, transform_indices = @transform_5, window_bounds = array<i64: 4, 128>}, {pipeline_mode = #tpu.pipeline_mode<synchronous>, transform_indices = @transform_6, window_bounds = array<i64: 128, 128>}, {transform_indices = @transform_7, window_bounds = array<i64: 8, 128>}]} {
    %c0 = arith.constant 0 : index
    %c0_0 = arith.constant 0 : index
    %0 = vector.load %arg1[%c0, %c0_0] : memref<8x96xf32, #tpu.memory_space<vmem>>, vector<8x96xf32>
    %c0_1 = arith.constant 0 : index
    %c0_2 = arith.constant 0 : index
    %1 = vector.load %arg2[%c0_1, %c0_2] : memref<96x128xf32, #tpu.memory_space<vmem>>, vector<96x128xf32>
    %cst = arith.constant dense<0.000000e+00> : vector<8x128xf32>
    %2 = tpu.matmul %0, %1, %cst {dimension_numbers = #tpu.dot_dimension_numbers<[1], [0], [0], [1], [0, 0, 1, 1], [], []>} : vector<8x96xf32>, vector<96x128xf32>, vector<8x128xf32> -> vector<8x128xf32>
    %c0_3 = arith.constant 0 : index
    %c0_4 = arith.constant 0 : index
    %3 = vector.load %arg3[%c0_3, %c0_4] : memref<1x128xf32, #tpu.memory_space<vmem>>, vector<1x128xf32>
    %4 = vector.broadcast %3 : vector<1x128xf32> to vector<8x128xf32>
    %5 = arith.addf %2, %4 : vector<8x128xf32>
    %c0_5 = arith.constant 0 : index
    %c0_6 = arith.constant 0 : index
    %6 = vector.load %arg7[%c0_5, %c0_6] : memref<128x128xf32, #tpu.memory_space<vmem>>, vector<128x128xf32>
    %cst_7 = arith.constant dense<0.000000e+00> : vector<8x128xf32>
    %7 = tpu.matmul %5, %6, %cst_7 {dimension_numbers = #tpu.dot_dimension_numbers<[1], [0], [0], [1], [0, 0, 1, 1], [], []>} : vector<8x128xf32>, vector<128x128xf32>, vector<8x128xf32> -> vector<8x128xf32>
    %8 = arith.subf %5, %7 : vector<8x128xf32>
    %9 = arith.mulf %8, %8 : vector<8x128xf32>
    %c0_8 = arith.constant 0 : index
    %c0_9 = arith.constant 0 : index
    %10 = vector.load %arg7[%c0_8, %c0_9] : memref<128x128xf32, #tpu.memory_space<vmem>>, vector<128x128xf32>
    %cst_10 = arith.constant dense<0.000000e+00> : vector<8x128xf32>
    %11 = tpu.matmul %9, %10, %cst_10 {dimension_numbers = #tpu.dot_dimension_numbers<[1], [0], [0], [1], [0, 0, 1, 1], [], []>} : vector<8x128xf32>, vector<128x128xf32>, vector<8x128xf32> -> vector<8x128xf32>
    %cst_11 = arith.constant 9.99999974E-6 : f32
    %12 = vector.broadcast %cst_11 : f32 to vector<8x128xf32>
    %13 = arith.addf %11, %12 : vector<8x128xf32>
    %14 = math.rsqrt %13 : vector<8x128xf32>
    %15 = arith.mulf %8, %14 : vector<8x128xf32>
    %c0_12 = arith.constant 0 : index
    %c0_13 = arith.constant 0 : index
    %16 = vector.load %arg4[%c0_12, %c0_13] : memref<1x128xf32, #tpu.memory_space<vmem>>, vector<1x128xf32>
    %17 = vector.broadcast %16 : vector<1x128xf32> to vector<8x128xf32>
    %18 = arith.mulf %15, %17 : vector<8x128xf32>
    %c0_14 = arith.constant 0 : index
    %c0_15 = arith.constant 0 : index
    %19 = vector.load %arg5[%c0_14, %c0_15] : memref<1x128xf32, #tpu.memory_space<vmem>>, vector<1x128xf32>
    %20 = vector.broadcast %19 : vector<1x128xf32> to vector<8x128xf32>
    %21 = arith.addf %18, %20 : vector<8x128xf32>
    %cst_16 = arith.constant 0.000000e+00 : f32
    %22 = vector.broadcast %cst_16 : f32 to vector<8x128xf32>
    %23 = arith.cmpf ogt, %21, %22 : vector<8x128xf32>
    %cst_17 = arith.constant 1.000000e-01 : f32
    %24 = vector.broadcast %cst_17 : f32 to vector<8x128xf32>
    %25 = arith.mulf %24, %21 : vector<8x128xf32>
    %26 = arith.select %23, %21, %25 : vector<8x128xi1>, vector<8x128xf32>
    %c0_18 = arith.constant 0 : index
    %c0_19 = arith.constant 0 : index
    %27 = vector.load %arg6[%c0_18, %c0_19] : memref<4x128xf32, #tpu.memory_space<vmem>>, vector<4x128xf32>
    %28 = tpu.concatenate %27, %27 in 0 : vector<4x128xf32>, vector<4x128xf32> -> vector<8x128xf32>
    %29 = arith.addf %26, %28 : vector<8x128xf32>
    %c0_20 = arith.constant 0 : index
    %c0_21 = arith.constant 0 : index
    %30 = vector.load %arg8[%c0_20, %c0_21] : memref<8x128xf32, #tpu.memory_space<vmem>>, vector<8x128xf32>
    tpu.vector_store %arg8[%c0_20, %c0_21], %29 {strides = array<i32>} : memref<8x128xf32, #tpu.memory_space<vmem>>, vector<8x128xf32>,
    return
  }
  func.func @transform_0(%arg0: i32) -> (i32, i32) {
    %c0_i32 = arith.constant 0 : i32
    %c0_i32_0 = arith.constant 0 : i32
    return %arg0, %c0_i32 : i32, i32
  }
  func.func @transform_1(%arg0: i32) -> (i32, i32) {
    %c0_i32 = arith.constant 0 : i32
    %c0_i32_0 = arith.constant 0 : i32
    %c0_i32_1 = arith.constant 0 : i32
    return %c0_i32, %c0_i32_0 : i32, i32
  }
  func.func @transform_2(%arg0: i32) -> (i32, i32) {
    %c0_i32 = arith.constant 0 : i32
    %c0_i32_0 = arith.constant 0 : i32
    %c0_i32_1 = arith.constant 0 : i32
    return %c0_i32, %c0_i32_0 : i32, i32
  }
  func.func @transform_3(%arg0: i32) -> (i32, i32) {
    %c0_i32 = arith.constant 0 : i32
    %c0_i32_0 = arith.constant 0 : i32
    %c0_i32_1 = arith.constant 0 : i32
    return %c0_i32, %c0_i32_0 : i32, i32
  }
  func.func @transform_4(%arg0: i32) -> (i32, i32) {
    %c0_i32 = arith.constant 0 : i32
    %c0_i32_0 = arith.constant 0 : i32
    %c0_i32_1 = arith.constant 0 : i32
    return %c0_i32, %c0_i32_0 : i32, i32
  }
  func.func @transform_5(%arg0: i32) -> (i32, i32) {
    %c0_i32 = arith.constant 0 : i32
    %c0_i32_0 = arith.constant 0 : i32
    %c0_i32_1 = arith.constant 0 : i32
    return %c0_i32, %c0_i32_0 : i32, i32
  }
  func.func @transform_6(%arg0: i32) -> (i32, i32) {
    %c0_i32 = arith.constant 0 : i32
    %c0_i32_0 = arith.constant 0 : i32
    %c0_i32_1 = arith.constant 0 : i32
    return %c0_i32, %c0_i32_0 : i32, i32
  }
  func.func @transform_7(%arg0: i32) -> (i32, i32) {
    %c0_i32 = arith.constant 0 : i32
    %c0_i32_0 = arith.constant 0 : i32
    return %arg0, %c0_i32 : i32, i32
  }
}

</mosaic_0001>

<llo_original>
// kernel: tpu_custom_call.1
$region0: #{tpu_custom_call.1}
  #allocation0 [shape = 'u32[]', space=smem, size = 0x4, offset = 0x4, fixed_abs, tag = 'smem constant byte address 0x4 - core index']
  #allocation1 [shape = 'u32[144,128]{1,0:T(1,128)}', space=vmem, size = 0x12000, scoped, tag = 'internal scratch']
  %s0 = inlined_call_operand.hbm [shape: f32[16,96], index: 0, kind: input, shape index: {}]
  %s1 = inlined_call_operand.hbm [shape: f32[96,128], index: 1, kind: input, shape index: {}]
  %s2 = inlined_call_operand.vmem [shape: f32[1,128], index: 2, kind: input, shape index: {}]
  %s3 = inlined_call_operand.vmem [shape: f32[1,128], index: 3, kind: input, shape index: {}]
  %s4 = inlined_call_operand.vmem [shape: f32[1,128], index: 4, kind: input, shape index: {}]
  %s5 = inlined_call_operand.vmem [shape: f32[4,128], index: 5, kind: input, shape index: {}]
  %s6 = inlined_call_operand.hbm [shape: f32[128,128], index: 6, kind: input, shape index: {}]
  %s7 = inlined_call_operand.hbm [shape: f32[16,128], index: 7, kind: output, shape index: {}]
  %s8 = sld [smem:[#allocation0]]
  $region73: #{tpu_custom_call.1} parent=0
    _
  %s10 = ssub.s32 1, %s8
  %s11 = scalar_select 0, %s10, %s8
  $region1: #{tpu_custom_call.1} parent=0
    #allocation2 [shape = 'u8[8192]{0}', space=vmem, size = 0x2000, scoped, tag = 'input window, operand 0']
    #allocation3 [shape = 's32[2]{0}', space=sflag, size = 0x8, scoped, tag = 'scoped memory for tpu_custom_call.1']
    #allocation4 [shape = 's32[2]{0}', space=sflag, size = 0x8, scoped, tag = 'scoped memory for tpu_custom_call.1']
    #allocation5 [shape = 'u8[49152]{0}', space=vmem, size = 0xc000, scoped, tag = 'input window, operand 1, single buffered']
    #allocation6 [shape = 's32[1]{0}', space=sflag, size = 0x4, scoped, tag = 'scoped memory for tpu_custom_call.1']
    #allocation7 [shape = 'u8[65536]{0}', space=vmem, size = 0x10000, scoped, tag = 'input window, operand 6, single buffered']
    #allocation8 [shape = 'u8[8192]{0}', space=vmem, size = 0x2000, scoped, tag = 'output window, operand 0']
    %12 = vsyncpa [#allocation3], 0
    %s13 = scalar_lea.sflag [#allocation3], 1
    %14 = vsyncpa %s13, 0
    %15 = vsyncpa [#allocation6], 0
    %16 = vsyncpa [#allocation4], 0
    %s17 = scalar_lea.sflag [#allocation4], 1
    %18 = vsyncpa %s17, 0
    loop: start=0, step=1, limit=4
    $region2: #{tpu_custom_call.1} parent=1 // loop_pre_header
      _
    $region3: #{tpu_custom_call.1} parent=1 // loop_header
      %s20 = sphi 0, %s24
      %p21 = scmp.ge.s32.totalorder %s20, 4
      %s30 = sphi 0, %s32
      %s33 = sphi 0, %s30
      %s34 = sphi 0, %s33
      %s50 = sphi 0, %s34
      %s54 = sphi 0, %s54
      %s56 = sphi 0, %s54
      %s57 = sphi 0, %s56
      %s71 = sphi 0, %s57
      %s75 = sphi 0, %s75
      %s77 = sphi 0, %s75
      %s78 = sphi 0, %s77
      %s92 = sphi 0, %s78
      %s96 = sphi 0, %s96
      %s98 = sphi 0, %s96
      %s99 = sphi 0, %s98
      %s113 = sphi 0, %s99
      %s117 = sphi 0, %s117
      %s119 = sphi 0, %s117
      %s120 = sphi 0, %s119
      %s134 = sphi 0, %s120
      %s138 = sphi 0, %s138
      %s140 = sphi 0, %s138
      %s141 = sphi 0, %s140
      %s155 = sphi 0, %s141
      %s159 = sphi 0, %s159
      %s161 = sphi 0, %s159
      %s162 = sphi 0, %s161
      %s176 = sphi 0, %s162
      %s182 = sphi 0, %s184
      %s185 = sphi 0, %s182
      %s186 = sphi 0, %s185
      %s202 = sphi 0, %s186
    $region4: #{tpu_custom_call.1} parent=1 // loop_header_branch
      %23 = sbr.rel (%p21) target = $region8
    $region5: #{tpu_custom_call.1} parent=1 // loop_body
      %s25 = ssub.s32 %s20, 1
      %s26 = ssub.s32 %s20, 2
      %s27 = sadd.s32 %s20, 1
      %s28 = ssub.s32 %s20, %s27
      %p29 = scmp.eq.s32.totalorder %s28, 0
      %s31 = sadd.s32 %s30, 1
      %s32 = scalar_select %p29, %s30, %s31
      %p35 = pneg %p29
      %p36 = scmp.eq.s32.totalorder %s20, 1
      %p37 = por %p35, %p36
      %p38 = scmp.ne.s32.totalorder %s30, %s33
      %p39 = scmp.eq.s32.totalorder %s20, 0
      %p40 = por %p38, %p39
      %p41 = scmp.ne.s32.totalorder %s30, %s33
      %p42 = scmp.eq.s32.totalorder %s25, 1
      %p43 = por %p41, %p42
      %p44 = scmp.ne.s32.totalorder %s33, %s34
      %p45 = scmp.eq.s32.totalorder %s25, 0
      %p46 = por %p44, %p45
      %p47 = scmp.ne.s32.totalorder %s33, %s34
      %p48 = scmp.eq.s32.totalorder %s26, 1
      %p49 = por %p47, %p48
      %p51 = scmp.ne.s32.totalorder %s34, %s50
      %p52 = scmp.eq.s32.totalorder %s26, 0
      %p53 = por %p51, %p52
      %s55 = sadd.s32 %s54, 1
      %p58 = scmp.eq.s32.totalorder %s20, 1
      %p59 = scmp.ne.s32.totalorder %s54, %s56
      %p60 = scmp.eq.s32.totalorder %s20, 0
      %p61 = por %p59, %p60
      %p62 = scmp.ne.s32.totalorder %s54, %s56
      %p63 = scmp.eq.s32.totalorder %s25, 1
      %p64 = por %p62, %p63
      %p65 = scmp.ne.s32.totalorder %s56, %s57
      %p66 = scmp.eq.s32.totalorder %s25, 0
      %p67 = por %p65, %p66
      %p68 = scmp.ne.s32.totalorder %s56, %s57
      %p69 = scmp.eq.s32.totalorder %s26, 1
      %p70 = por %p68, %p69
      %p72 = scmp.ne.s32.totalorder %s57, %s71
      %p73 = scmp.eq.s32.totalorder %s26, 0
      %p74 = por %p72, %p73
      %s76 = sadd.s32 %s75, 1
      %p79 = scmp.eq.s32.totalorder %s20, 1
      %p80 = scmp.ne.s32.totalorder %s75, %s77
      %p81 = scmp.eq.s32.totalorder %s20, 0
      %p82 = por %p80, %p81
      %p83 = scmp.ne.s32.totalorder %s75, %s77
      %p84 = scmp.eq.s32.totalorder %s25, 1
      %p85 = por %p83, %p84
      %p86 = scmp.ne.s32.totalorder %s77, %s78
      %p87 = scmp.eq.s32.totalorder %s25, 0
      %p88 = por %p86, %p87
      %p89 = scmp.ne.s32.totalorder %s77, %s78
      %p90 = scmp.eq.s32.totalorder %s26, 1
      %p91 = por %p89, %p90
      %p93 = scmp.ne.s32.totalorder %s78, %s92
      %p94 = scmp.eq.s32.totalorder %s26, 0
      %p95 = por %p93, %p94
      %s97 = sadd.s32 %s96, 1
      %p100 = scmp.eq.s32.totalorder %s20, 1
      %p101 = scmp.ne.s32.totalorder %s96, %s98
      %p102 = scmp.eq.s32.totalorder %s20, 0
      %p103 = por %p101, %p102
      %p104 = scmp.ne.s32.totalorder %s96, %s98
      %p105 = scmp.eq.s32.totalorder %s25, 1
      %p106 = por %p104, %p105
      %p107 = scmp.ne.s32.totalorder %s98, %s99
      %p108 = scmp.eq.s32.totalorder %s25, 0
      %p109 = por %p107, %p108
      %p110 = scmp.ne.s32.totalorder %s98, %s99
      %p111 = scmp.eq.s32.totalorder %s26, 1
      %p112 = por %p110, %p111
      %p114 = scmp.ne.s32.totalorder %s99, %s113
      %p115 = scmp.eq.s32.totalorder %s26, 0
      %p116 = por %p114, %p115
      %s118 = sadd.s32 %s117, 1
      %p121 = scmp.eq.s32.totalorder %s20, 1
      %p122 = scmp.ne.s32.totalorder %s117, %s119
      %p123 = scmp.eq.s32.totalorder %s20, 0
      %p124 = por %p122, %p123
      %p125 = scmp.ne.s32.totalorder %s117, %s119
      %p126 = scmp.eq.s32.totalorder %s25, 1
      %p127 = por %p125, %p126
      %p128 = scmp.ne.s32.totalorder %s119, %s120
      %p129 = scmp.eq.s32.totalorder %s25, 0
      %p130 = por %p128, %p129
      %p131 = scmp.ne.s32.totalorder %s119, %s120
      %p132 = scmp.eq.s32.totalorder %s26, 1
      %p133 = por %p131, %p132
      %p135 = scmp.ne.s32.totalorder %s120, %s134
      %p136 = scmp.eq.s32.totalorder %s26, 0
      %p137 = por %p135, %p136
      %s139 = sadd.s32 %s138, 1
      %p142 = scmp.eq.s32.totalorder %s20, 1
      %p143 = scmp.ne.s32.totalorder %s138, %s140
      %p144 = scmp.eq.s32.totalorder %s20, 0
      %p145 = por %p143, %p144
      %p146 = scmp.ne.s32.totalorder %s138, %s140
      %p147 = scmp.eq.s32.totalorder %s25, 1
      %p148 = por %p146, %p147
      %p149 = scmp.ne.s32.totalorder %s140, %s141
      %p150 = scmp.eq.s32.totalorder %s25, 0
      %p151 = por %p149, %p150
      %p152 = scmp.ne.s32.totalorder %s140, %s141
      %p153 = scmp.eq.s32.totalorder %s26, 1
      %p154 = por %p152, %p153
      %p156 = scmp.ne.s32.totalorder %s141, %s155
      %p157 = scmp.eq.s32.totalorder %s26, 0
      %p158 = por %p156, %p157
      %s160 = sadd.s32 %s159, 1
      %p163 = scmp.eq.s32.totalorder %s20, 1
      %p164 = scmp.ne.s32.totalorder %s159, %s161
      %p165 = scmp.eq.s32.totalorder %s20, 0
      %p166 = por %p164, %p165
      %p167 = scmp.ne.s32.totalorder %s159, %s161
      %p168 = scmp.eq.s32.totalorder %s25, 1
      %p169 = por %p167, %p168
      %p170 = scmp.ne.s32.totalorder %s161, %s162
      %p171 = scmp.eq.s32.totalorder %s25, 0
      %p172 = por %p170, %p171
      %p173 = scmp.ne.s32.totalorder %s161, %s162
      %p174 = scmp.eq.s32.totalorder %s26, 1
      %p175 = por %p173, %p174
      %p177 = scmp.ne.s32.totalorder %s162, %s176
      %p178 = scmp.eq.s32.totalorder %s26, 0
      %p179 = por %p177, %p178
      %s180 = ssub.s32 %s20, %s27
      %p181 = scmp.eq.s32.totalorder %s180, 0
      %s183 = sadd.s32 %s182, 1
      %s184 = scalar_select %p181, %s182, %s183
      %p187 = pneg %p181
      %p188 = scmp.eq.s32.totalorder %s20, 1
      %p189 = por %p187, %p188
      %p190 = scmp.ne.s32.totalorder %s182, %s185
      %p191 = scmp.eq.s32.totalorder %s20, 0
      %p192 = por %p190, %p191
      %p193 = scmp.ne.s32.totalorder %s182, %s185
      %p194 = scmp.eq.s32.totalorder %s25, 1
      %p195 = por %p193, %p194
      %p196 = scmp.ne.s32.totalorder %s185, %s186
      %p197 = scmp.eq.s32.totalorder %s25, 0
      %p198 = por %p196, %p197
      %p199 = scmp.ne.s32.totalorder %s185, %s186
      %p200 = scmp.eq.s32.totalorder %s26, 1
      %p201 = por %p199, %p200
      %p203 = scmp.ne.s32.totalorder %s186, %s202
      %p204 = scmp.eq.s32.totalorder %s26, 0
      %p205 = por %p203, %p204
      %p206 = scmp.le.s32.totalorder 1, %s20
      %p207 = scmp.lt.s32.totalorder %s20, 3
      %p208 = pnand %p206, %p207
      %p209 = pneg %p208
      // Predicated region
      $region9: #{tpu_custom_call.1} parent=5 // pred_check
        _
      $region10: #{tpu_custom_call.1} parent=5 // pred_check_branch
        %211 = sbr.rel (%p208) target = $region12
      $region11: #{tpu_custom_call.1} parent=5 // pred_region
        %s212 = ssub.s32 %s20, 1
        // Predicated region
        $region13: #{tpu_custom_call.1} parent=11 // pred_check
          %p213 = pneg %p67
        $region14: #{tpu_custom_call.1} parent=11 // pred_check_branch
          %215 = sbr.rel (%p213) target = $region16
        $region15: #{tpu_custom_call.1} parent=11 // pred_region
          %s217 = ssub.s32 1536, 1536
          %218 = vsyncadd [#allocation6], %s217
          %s219 = sshll.u32 [#allocation5], 4
          %s220 = int_to_ptr.vmem [resolvable:$true] %s219
          %225 = dma.hbm_to_vmem [thread:$0]  %s1, 1536, %s220, [#allocation6], 128, 128, 8
        $region16: #{tpu_custom_call.1} parent=11 // pred_fallthru
          _
        // Predicated region
        $region17: #{tpu_custom_call.1} parent=11 // pred_check
          %p226 = pneg %p88
        $region18: #{tpu_custom_call.1} parent=11 // pred_check_branch
          %228 = sbr.rel (%p226) target = $region20
        $region19: #{tpu_custom_call.1} parent=11 // pred_region
          _
        $region20: #{tpu_custom_call.1} parent=11 // pred_fallthru
          _
        // Predicated region
        $region21: #{tpu_custom_call.1} parent=11 // pred_check
          %p229 = pneg %p109
        $region22: #{tpu_custom_call.1} parent=11 // pred_check_branch
          %231 = sbr.rel (%p229) target = $region24
        $region23: #{tpu_custom_call.1} parent=11 // pred_region
          _
        $region24: #{tpu_custom_call.1} parent=11 // pred_fallthru
          _
        // Predicated region
        $region25: #{tpu_custom_call.1} parent=11 // pred_check
          %p232 = pneg %p130
        $region26: #{tpu_custom_call.1} parent=11 // pred_check_branch
          %234 = sbr.rel (%p232) target = $region28
        $region27: #{tpu_custom_call.1} parent=11 // pred_region
          _
        $region28: #{tpu_custom_call.1} parent=11 // pred_fallthru
          _
        // Predicated region
        $region29: #{tpu_custom_call.1} parent=11 // pred_check
          %p235 = pneg %p151
        $region30: #{tpu_custom_call.1} parent=11 // pred_check_branch
          %237 = sbr.rel (%p235) target = $region32
        $region31: #{tpu_custom_call.1} parent=11 // pred_region
          _
        $region32: #{tpu_custom_call.1} parent=11 // pred_fallthru
          _
        // Predicated region
        $region33: #{tpu_custom_call.1} parent=11 // pred_check
          %p238 = pneg %p172
        $region34: #{tpu_custom_call.1} parent=11 // pred_check_branch
          %240 = sbr.rel (%p238) target = $region36
        $region35: #{tpu_custom_call.1} parent=11 // pred_region
          %s242 = ssub.s32 2048, 2048
          %243 = vsyncadd [#allocation6], %s242
          %s244 = sshll.u32 [#allocation7], 4
          %s245 = int_to_ptr.vmem [resolvable:$true] %s244
          %250 = dma.hbm_to_vmem [thread:$0]  %s6, 2048, %s245, [#allocation6], 128, 128, 8
        $region36: #{tpu_custom_call.1} parent=11 // pred_fallthru
          _
      $region12: #{tpu_custom_call.1} parent=5 // pred_fallthru
        _
      %p251 = scmp.lt.s32.totalorder %s20, 2
      // Predicated region
      $region37: #{tpu_custom_call.1} parent=5 // pred_check
        %p252 = pneg %p251
      $region38: #{tpu_custom_call.1} parent=5 // pred_check_branch
        %254 = sbr.rel (%p252) target = $region40
      $region39: #{tpu_custom_call.1} parent=5 // pred_region
        // Predicated region
        $region41: #{tpu_custom_call.1} parent=39 // pred_check
          %p255 = pneg %p40
        $region42: #{tpu_custom_call.1} parent=39 // pred_check_branch
          %257 = sbr.rel (%p255) target = $region44
        $region43: #{tpu_custom_call.1} parent=39 // pred_region
          %s258 = sand.u32 %s30, 1
          %s259 = scalar_lea.sflag [#allocation3], %s258
          %s260 = sand.u32 %s30, 1
          %s261 = smul.addr %s260, 8
          %s262 = scalar_lea.vmem [#allocation2], %s261
          %s264 = ssub.s32 128, 128
          %265 = vsyncadd %s259, %s264
          %s266 = smul.addr %s20, 128
          %s267 = scalar_lea.hbm %s0, %s266
          %s269 = sshll.u32 %s262, 4
          %s270 = int_to_ptr.vmem [resolvable:$true] %s269
          %272 = dma.hbm_to_vmem [thread:$0]  %s267, 128, %s270, %s259
        $region44: #{tpu_custom_call.1} parent=39 // pred_fallthru
          _
      $region40: #{tpu_custom_call.1} parent=5 // pred_fallthru
        _
      %p273 = scmp.le.s32.totalorder 1, %s20
      %p274 = scmp.lt.s32.totalorder %s20, 3
      %p275 = pnand %p273, %p274
      %p276 = pneg %p275
      // Predicated region
      $region45: #{tpu_custom_call.1} parent=5 // pred_check
        _
      $region46: #{tpu_custom_call.1} parent=5 // pred_check_branch
        %278 = sbr.rel (%p275) target = $region48
      $region47: #{tpu_custom_call.1} parent=5 // pred_region
        %s279 = ssub.s32 %s20, 1
        %s280 = sand.u32 %s33, 1
        %s281 = scalar_lea.sflag [#allocation3], %s280
        %s282 = sand.u32 %s33, 1
        %s283 = smul.addr %s282, 8
        %s284 = scalar_lea.vmem [#allocation2], %s283
        // Predicated region
        $region49: #{tpu_custom_call.1} parent=47 // pred_check
          %p285 = pneg %p46
        $region50: #{tpu_custom_call.1} parent=47 // pred_check_branch
          %287 = sbr.rel (%p285) target = $region52
        $region51: #{tpu_custom_call.1} parent=47 // pred_region
          %288 = dma.done %s281, 128
        $region52: #{tpu_custom_call.1} parent=47 // pred_fallthru
          _
        // Predicated region
        $region53: #{tpu_custom_call.1} parent=47 // pred_check
          %p289 = pneg %p67
        $region54: #{tpu_custom_call.1} parent=47 // pred_check_branch
          %291 = sbr.rel (%p289) target = $region56
        $region55: #{tpu_custom_call.1} parent=47 // pred_region
          %292 = dma.done [#allocation6], 1536
        $region56: #{tpu_custom_call.1} parent=47 // pred_fallthru
          _
        // Predicated region
        $region57: #{tpu_custom_call.1} parent=47 // pred_check
          %p293 = pneg %p172
        $region58: #{tpu_custom_call.1} parent=47 // pred_check_branch
          %295 = sbr.rel (%p293) target = $region60
        $region59: #{tpu_custom_call.1} parent=47 // pred_region
          %296 = dma.done [#allocation6], 2048
        $region60: #{tpu_custom_call.1} parent=47 // pred_fallthru
          _
        %s297 = sand.u32 %s33, 1
        %s298 = scalar_lea.sflag [#allocation3], %s297
        %s299 = sand.u32 %s33, 1
        %s300 = smul.addr %s299, 8
        %s301 = scalar_lea.vmem [#allocation2], %s300
        %p302 = pneg %p46
        %p303 = pneg %p43
        %p304 = pneg %p67
        %p305 = pneg %p64
        %p306 = pneg %p88
        %p307 = pneg %p85
        %p308 = pneg %p109
        %p309 = pneg %p106
        %p310 = pneg %p130
        %p311 = pneg %p127
        %p312 = pneg %p151
        %p313 = pneg %p148
        %p314 = pneg %p172
        %p315 = pneg %p169
        %p316 = pneg %p198
        %p317 = pneg %p195
        %s318 = sand.u32 %s185, 1
        %s319 = scalar_lea.sflag [#allocation4], %s318
        %s320 = sand.u32 %s185, 1
        %s321 = smul.addr %s320, 8
        %s322 = scalar_lea.vmem [#allocation8], %s321
        %v323 = vld [vmem:[%s284] sm:$0xff]
        %v324 = vld [vmem:[#allocation5] sm:$0xff]
        %v325 = vld [vmem:[#allocation5 + $0x8] sm:$0xff]
        %v326 = vld [vmem:[#allocation5 + $0x10] sm:$0xff]
        %v327 = vld [vmem:[#allocation5 + $0x18] sm:$0xff]
        %v328 = vld [vmem:[#allocation5 + $0x20] sm:$0xff]
        %v329 = vld [vmem:[#allocation5 + $0x28] sm:$0xff]
        %v330 = vld [vmem:[#allocation5 + $0x30] sm:$0xff]
        %v331 = vld [vmem:[#allocation5 + $0x38] sm:$0xff]
        %v332 = vld [vmem:[#allocation5 + $0x40] sm:$0xff]
        %v333 = vld [vmem:[#allocation5 + $0x48] sm:$0xff]
        %v334 = vld [vmem:[#allocation5 + $0x50] sm:$0xff]
        %v335 = vld [vmem:[#allocation5 + $0x58] sm:$0xff]
        %v336 = vld [vmem:[%s2] sm:$0x1]
        %v338 = vlaneseq
        %v339 = vshrl.u32 %v338, 7
        %v340 = vsub.s32 0, %v339
        %v341 = vrot.slane %v336, %v340
        %vm343 = vcmask 785408
        %v345 = vsel %vm343, %v323, 0
        %347 = vmatprep.subr.mxu0 0.0
        %348 = vmatpush1.msra.mxu0 %v324
        %349 = vmatprep.subr.mxu0 0.0
        %350 = vmatpush1.msra.mxu0 %v325
        %351 = vmatprep.subr.mxu0 0.0
        %352 = vmatpush1.msra.mxu0 %v326
        %353 = vmatprep.subr.mxu0 0.0
        %354 = vmatpush1.msra.mxu0 %v327
        %355 = vmatprep.subr.mxu0 0.0
        %356 = vmatpush1.msra.mxu0 %v328
        %357 = vmatprep.subr.mxu0 0.0
        %358 = vmatpush1.msra.mxu0 %v329
        %359 = vmatprep.subr.mxu0 0.0
        %360 = vmatpush1.msra.mxu0 %v330
        %361 = vmatprep.subr.mxu0 0.0
        %362 = vmatpush1.msra.mxu0 %v331
        %363 = vmatprep.subr.mxu0 0.0
        %364 = vmatpush1.msra.mxu0 %v332
        %365 = vmatprep.subr.mxu0 0.0
        %366 = vmatpush1.msra.mxu0 %v333
        %367 = vmatprep.subr.mxu0 0.0
        %368 = vmatpush1.msra.mxu0 %v334
        %369 = vmatprep.subr.mxu0 0.0
        %370 = vmatpush1.msra.mxu0 %v335
        %371 = vmatprep.subr.mxu0 0.0
        %372 = vmatpush1.msra.mxu0 0.0
        %373 = vmatprep.subr.mxu0 0.0
        %374 = vmatpush1.msra.mxu0 0.0
        %375 = vmatprep.subr.mxu0 0.0
        %376 = vmatpush1.msra.mxu0 0.0
        %377 = vmatprep.subr.mxu0 0.0
        %378 = vmatpush1.msra.mxu0 0.0
        %379 = vmatprep.subr.mxu0 0.0
        %380 = vmatpush1.msra.mxu0 0.0
        %381 = vmatprep.subr.mxu0 0.0
        %382 = vmatpush1.msra.mxu0 0.0
        %383 = vmatprep.subr.mxu0 0.0
        %384 = vmatpush1.msra.mxu0 0.0
        %385 = vmatprep.subr.mxu0 0.0
        %386 = vmatpush1.msra.mxu0 0.0
        %387 = vmatprep.subr.mxu0 0.0
        %388 = vmatpush1.msra.mxu0 0.0
        %389 = vmatprep.subr.mxu0 0.0
        %390 = vmatpush1.msra.mxu0 0.0
        %391 = vmatprep.subr.mxu0 0.0
        %392 = vmatpush1.msra.mxu0 0.0
        %393 = vmatprep.subr.mxu0 0.0
        %394 = vmatpush1.msra.mxu0 0.0
        %395 = vmatprep.subr.mxu0 0.0
        %396 = vmatpush1.msra.mxu0 0.0
        %397 = vmatprep.subr.mxu0 0.0
        %398 = vmatpush1.msra.mxu0 0.0
        %399 = vmatprep.subr.mxu0 0.0
        %400 = vmatpush1.msra.mxu0 0.0
        %401 = vmatprep.subr.mxu0 0.0
        %402 = vmatpush1.msra.mxu0 0.0
        %403 = vmatprep.subr.mxu0 0.0
        %404 = vmatpush1.msra.mxu0 0.0
        %405 = vmatprep.subr.mxu0 0.0
        %406 = vmatpush1.msra.mxu0 0.0
        %407 = vmatprep.subr.mxu0 0.0
        %408 = vmatpush1.msra.mxu0 0.0
        %409 = vmatprep.subr.mxu0 0.0
        %410 = vmatpush1.msra.mxu0 0.0
        %411 = vmatprep.mubr.f32.mxu0 0.0
        %412 = vmatmul.mubr.f32.gmra.mrb[0].mxu0 %v345
        %v413 = vpop.f32.mrb[0].mxu0
        %v414 = vadd.f32 %v341, %v413
        %v415 = vpop.f32.mrb[0].mxu0
        %416 = vdwg.mxu0
        %v417 = vld [vmem:[#allocation7] sm:$0xff]
        %v418 = vld [vmem:[#allocation7 + $0x8] sm:$0xff]
        %v419 = vld [vmem:[#allocation7 + $0x10] sm:$0xff]
        %v420 = vld [vmem:[#allocation7 + $0x18] sm:$0xff]
        %v421 = vld [vmem:[#allocation7 + $0x20] sm:$0xff]
        %v422 = vld [vmem:[#allocation7 + $0x28] sm:$0xff]
        %v423 = vld [vmem:[#allocation7 + $0x30] sm:$0xff]
        %v424 = vld [vmem:[#allocation7 + $0x38] sm:$0xff]
        %v425 = vld [vmem:[#allocation7 + $0x40] sm:$0xff]
        %v426 = vld [vmem:[#allocation7 + $0x48] sm:$0xff]
        %v427 = vld [vmem:[#allocation7 + $0x50] sm:$0xff]
        %v428 = vld [vmem:[#allocation7 + $0x58] sm:$0xff]
        %v429 = vld [vmem:[#allocation7 + $0x60] sm:$0xff]
        %v430 = vld [vmem:[#allocation7 + $0x68] sm:$0xff]
        %v431 = vld [vmem:[#allocation7 + $0x70] sm:$0xff]
        %v432 = vld [vmem:[#allocation7 + $0x78] sm:$0xff]
        %433 = vmatprep.subr.mxu0 0.0
        %434 = vmatpush1.msra.mxu0 %v417
        %435 = vmatprep.subr.mxu0 0.0
        %436 = vmatpush1.msra.mxu0 %v418
        %437 = vmatprep.subr.mxu0 0.0
        %438 = vmatpush1.msra.mxu0 %v419
        %439 = vmatprep.subr.mxu0 0.0
        %440 = vmatpush1.msra.mxu0 %v420
        %441 = vmatprep.subr.mxu0 0.0
        %442 = vmatpush1.msra.mxu0 %v421
        %443 = vmatprep.subr.mxu0 0.0
        %444 = vmatpush1.msra.mxu0 %v422
        %445 = vmatprep.subr.mxu0 0.0
        %446 = vmatpush1.msra.mxu0 %v423
        %447 = vmatprep.subr.mxu0 0.0
        %448 = vmatpush1.msra.mxu0 %v424
        %449 = vmatprep.subr.mxu0 0.0
        %450 = vmatpush1.msra.mxu0 %v425
        %451 = vmatprep.subr.mxu0 0.0
        %452 = vmatpush1.msra.mxu0 %v426
        %453 = vmatprep.subr.mxu0 0.0
        %454 = vmatpush1.msra.mxu0 %v427
        %455 = vmatprep.subr.mxu0 0.0
        %456 = vmatpush1.msra.mxu0 %v428
        %457 = vmatprep.subr.mxu0 0.0
        %458 = vmatpush1.msra.mxu0 %v429
        %459 = vmatprep.subr.mxu0 0.0
        %460 = vmatpush1.msra.mxu0 %v430
        %461 = vmatprep.subr.mxu0 0.0
        %462 = vmatpush1.msra.mxu0 %v431
        %463 = vmatprep.subr.mxu0 0.0
        %464 = vmatpush1.msra.mxu0 %v432
        %465 = vmatprep.subr.mxu0 0.0
        %466 = vmatpush1.msra.mxu0 0.0
        %467 = vmatprep.subr.mxu0 0.0
        %468 = vmatpush1.msra.mxu0 0.0
        %469 = vmatprep.subr.mxu0 0.0
        %470 = vmatpush1.msra.mxu0 0.0
        %471 = vmatprep.subr.mxu0 0.0
        %472 = vmatpush1.msra.mxu0 0.0
        %473 = vmatprep.subr.mxu0 0.0
        %474 = vmatpush1.msra.mxu0 0.0
        %475 = vmatprep.subr.mxu0 0.0
        %476 = vmatpush1.msra.mxu0 0.0
        %477 = vmatprep.subr.mxu0 0.0
        %478 = vmatpush1.msra.mxu0 0.0
        %479 = vmatprep.subr.mxu0 0.0
        %480 = vmatpush1.msra.mxu0 0.0
        %481 = vmatprep.subr.mxu0 0.0
        %482 = vmatpush1.msra.mxu0 0.0
        %483 = vmatprep.subr.mxu0 0.0
        %484 = vmatpush1.msra.mxu0 0.0
        %485 = vmatprep.subr.mxu0 0.0
        %486 = vmatpush1.msra.mxu0 0.0
        %487 = vmatprep.subr.mxu0 0.0
        %488 = vmatpush1.msra.mxu0 0.0
        %489 = vmatprep.subr.mxu0 0.0
        %490 = vmatpush1.msra.mxu0 0.0
        %491 = vmatprep.subr.mxu0 0.0
        %492 = vmatpush1.msra.mxu0 0.0
        %493 = vmatprep.subr.mxu0 0.0
        %494 = vmatpush1.msra.mxu0 0.0
        %495 = vmatprep.subr.mxu0 0.0
        %496 = vmatpush1.msra.mxu0 0.0
        %497 = vmatprep.mubr.f32.mxu0 0.0
        %498 = vmatmul.mubr.f32.gmra.mrb[0].mxu0 %v414
        %v499 = vpop.f32.mrb[0].mxu0
        %v500 = vadd.f32 0.0, %v499
        %v501 = vpop.f32.mrb[0].mxu0
        %502 = vdwg.mxu0
        %v503 = vsub.f32 %v414, %v500
        %v504 = vmul.f32 %v503, %v503
        %505 = vmatprep.subr.mxu0 0.0
        %506 = vmatpush1.msra.mxu0 %v417
        %507 = vmatprep.subr.mxu0 0.0
        %508 = vmatpush1.msra.mxu0 %v418
        %509 = vmatprep.subr.mxu0 0.0
        %510 = vmatpush1.msra.mxu0 %v419
        %511 = vmatprep.subr.mxu0 0.0
        %512 = vmatpush1.msra.mxu0 %v420
        %513 = vmatprep.subr.mxu0 0.0
        %514 = vmatpush1.msra.mxu0 %v421
        %515 = vmatprep.subr.mxu0 0.0
        %516 = vmatpush1.msra.mxu0 %v422
        %517 = vmatprep.subr.mxu0 0.0
        %518 = vmatpush1.msra.mxu0 %v423
        %519 = vmatprep.subr.mxu0 0.0
        %520 = vmatpush1.msra.mxu0 %v424
        %521 = vmatprep.subr.mxu0 0.0
        %522 = vmatpush1.msra.mxu0 %v425
        %523 = vmatprep.subr.mxu0 0.0
        %524 = vmatpush1.msra.mxu0 %v426
        %525 = vmatprep.subr.mxu0 0.0
        %526 = vmatpush1.msra.mxu0 %v427
        %527 = vmatprep.subr.mxu0 0.0
        %528 = vmatpush1.msra.mxu0 %v428
        %529 = vmatprep.subr.mxu0 0.0
        %530 = vmatpush1.msra.mxu0 %v429
        %531 = vmatprep.subr.mxu0 0.0
        %532 = vmatpush1.msra.mxu0 %v430
        %533 = vmatprep.subr.mxu0 0.0
        %534 = vmatpush1.msra.mxu0 %v431
        %535 = vmatprep.subr.mxu0 0.0
        %536 = vmatpush1.msra.mxu0 %v432
        %537 = vmatprep.subr.mxu0 0.0
        %538 = vmatpush1.msra.mxu0 0.0
        %539 = vmatprep.subr.mxu0 0.0
        %540 = vmatpush1.msra.mxu0 0.0
        %541 = vmatprep.subr.mxu0 0.0
        %542 = vmatpush1.msra.mxu0 0.0
        %543 = vmatprep.subr.mxu0 0.0
        %544 = vmatpush1.msra.mxu0 0.0
        %545 = vmatprep.subr.mxu0 0.0
        %546 = vmatpush1.msra.mxu0 0.0
        %547 = vmatprep.subr.mxu0 0.0
        %548 = vmatpush1.msra.mxu0 0.0
        %549 = vmatprep.subr.mxu0 0.0
        %550 = vmatpush1.msra.mxu0 0.0
        %551 = vmatprep.subr.mxu0 0.0
        %552 = vmatpush1.msra.mxu0 0.0
        %553 = vmatprep.subr.mxu0 0.0
        %554 = vmatpush1.msra.mxu0 0.0
        %555 = vmatprep.subr.mxu0 0.0
        %556 = vmatpush1.msra.mxu0 0.0
        %557 = vmatprep.subr.mxu0 0.0
        %558 = vmatpush1.msra.mxu0 0.0
        %559 = vmatprep.subr.mxu0 0.0
        %560 = vmatpush1.msra.mxu0 0.0
        %561 = vmatprep.subr.mxu0 0.0
        %562 = vmatpush1.msra.mxu0 0.0
        %563 = vmatprep.subr.mxu0 0.0
        %564 = vmatpush1.msra.mxu0 0.0
        %565 = vmatprep.subr.mxu0 0.0
        %566 = vmatpush1.msra.mxu0 0.0
        %567 = vmatprep.subr.mxu0 0.0
        %568 = vmatpush1.msra.mxu0 0.0
        %569 = vmatprep.mubr.f32.mxu0 0.0
        %570 = vmatmul.mubr.f32.gmra.mrb[0].mxu0 %v504
        %v571 = vpop.f32.mrb[0].mxu0
        %v572 = vadd.f32 1e-05, %v571
        %v573 = vpop.f32.mrb[0].mxu0
        %574 = vdwg.mxu0
        %v575 = vrsqrt.pop %v572
        %v576 = vmul.f32 %v503, %v575
        %v577 = vld [vmem:[%s3] sm:$0x1]
        %v579 = vlaneseq
        %v580 = vshrl.u32 %v579, 7
        %v581 = vsub.s32 0, %v580
        %v582 = vrot.slane %v577, %v581
        %v584 = vmul.f32 %v576, %v582
        %v585 = vld [vmem:[%s4] sm:$0x1]
        %v587 = vlaneseq
        %v588 = vshrl.u32 %v587, 7
        %v589 = vsub.s32 0, %v588
        %v590 = vrot.slane %v585, %v589
        %v592 = vadd.f32 %v584, %v590
        %vm593 = vcmp.gt.f32.partialorder %v592, 0.0
        %v594 = vmul.f32 %v592, 0.1
        %v595 = vsel %vm593, %v592, %v594
        %v596 = vld [vmem:[%s5] sm:$0xf]
        %v598 = vrot.slane %v596, 4
        %vm600 = vcmask 1043456
        %v601 = vsel %vm600, %v596, %v598
        %v602 = vadd.f32 %v595, %v601
        %603 = vst [vmem:[%s322] sm:$0xff] %v602
        %s604 = sand.u32 %s185, 1
        %s605 = scalar_lea.sflag [#allocation4], %s604
        %s606 = sand.u32 %s185, 1
        %s607 = smul.addr %s606, 8
        %s608 = scalar_lea.vmem [#allocation8], %s607
        // Predicated region
        $region61: #{tpu_custom_call.1} parent=47 // pred_check
          %p609 = pneg %p195
        $region62: #{tpu_custom_call.1} parent=47 // pred_check_branch
          %611 = sbr.rel (%p609) target = $region64
        $region63: #{tpu_custom_call.1} parent=47 // pred_region
          %s613 = ssub.s32 128, 128
          %614 = vsyncadd %s605, %s613
          %s615 = smul.addr %s25, 128
          %s616 = scalar_lea.hbm %s7, %s615
          %s618 = sshll.u32 %s608, 4
          %s619 = int_to_ptr.vmem [resolvable:$true] %s618
          %621 = dma.vmem_to_hbm [thread:$0]  %s619, 128, %s616, %s605
        $region64: #{tpu_custom_call.1} parent=47 // pred_fallthru
          _
      $region48: #{tpu_custom_call.1} parent=5 // pred_fallthru
        _
      %p622 = scmp.le.s32.totalorder 2, %s20
      // Predicated region
      $region65: #{tpu_custom_call.1} parent=5 // pred_check
        %p623 = pneg %p622
      $region66: #{tpu_custom_call.1} parent=5 // pred_check_branch
        %625 = sbr.rel (%p623) target = $region68
      $region67: #{tpu_custom_call.1} parent=5 // pred_region
        %s626 = ssub.s32 %s20, 2
        // Predicated region
        $region69: #{tpu_custom_call.1} parent=67 // pred_check
          %p627 = pneg %p201
        $region70: #{tpu_custom_call.1} parent=67 // pred_check_branch
          %629 = sbr.rel (%p627) target = $region72
        $region71: #{tpu_custom_call.1} parent=67 // pred_region
          %s630 = sand.u32 %s186, 1
          %s631 = scalar_lea.sflag [#allocation4], %s630
          %s632 = sand.u32 %s186, 1
          %s633 = smul.addr %s632, 8
          %s634 = scalar_lea.vmem [#allocation8], %s633
          %635 = dma.done %s631, 128
        $region72: #{tpu_custom_call.1} parent=67 // pred_fallthru
          _
      $region68: #{tpu_custom_call.1} parent=5 // pred_fallthru
        _
    $region6: #{tpu_custom_call.1} parent=1 // loop_footer
      %s24 = sadd.s32 1, %s20
    $region7: #{tpu_custom_call.1} parent=1 // loop_footer_branch
      %19 = sbr.rel target = $region3
    $region8: #{tpu_custom_call.1} parent=1 // loop_exit
      _
    %636 = vsyncpa [#allocation3], 1
    %s637 = scalar_lea.sflag [#allocation3], 1
    %638 = vsyncpa %s637, 1
    %639 = vsyncpa [#allocation6], 1
    %640 = vsyncpa [#allocation4], 1
    %s641 = scalar_lea.sflag [#allocation4], 1
    %642 = vsyncpa %s641, 1

</llo_original>
